<compile_context>
chip_gen: v5e
topology: v5e:2x2
jax: 0.10.0
libtpu: 0.0.40
codegen_flags: <defaults>
</compile_context>

<pallas_src>
import jax
import jax.numpy as jnp
from jax.experimental import pallas as pl
from jax.experimental.pallas import tpu as pltpu


def deepfm_forward(x, params, *, embedding_dim, hidden_dim,
                   batch_block=512, emb_dtype=jnp.bfloat16):
    emb_tbl, wl, bl, w1, b1, w2, b2, wf, bf = params
    B, F = x.shape
    E = embedding_dim
    H = hidden_dim
    FE = F * E
    assert H >= 2, "hidden_dim must be >= 2 (two scalars are packed into row 2)"

    # ---- pick the batch tile ------------------------------------------------
    # Large tiles amortize the ~0.35us per-grid-step overhead; keep >= 2 grid
    # steps when possible so v7x can shard the parallel axis across its 2 TCs.
    BB = max(8, (min(batch_block, max(B, 8)) // 8) * 8)
    while BB > 8 and -(-B // BB) < 2:
        BB = max(8, ((BB // 2) // 8) * 8)
    n_blocks = -(-B // BB)
    B_pad = n_blocks * BB

    # ---- glue: embedding gather + flatten, streamed in a narrow dtype -------
    emb = emb_tbl[x].reshape(B, FE).astype(emb_dtype)          # (B, FE)
    if B_pad != B:
        emb = jnp.pad(emb, ((0, B_pad - B), (0, 0)))           # zero rows, sliced off later

    # ---- fold final_fc into upstream parameters -----------------------------
    wf3 = wf.reshape(3).astype(jnp.float32)
    wl_s = wl.reshape(E, 1).astype(jnp.float32) * wf3[0]        # linear weight * wf0
    w2_row = (w2.reshape(H) * wf3[2]).astype(jnp.float32)       # fc2 weight * wf2
    inter_scale = 0.5 * wf3[1]
    total_bias = (bf.reshape(()) + bl.reshape(()) * wf3[0]
                  + b2.reshape(()) * wf3[2]).astype(jnp.float32)

    # ---- fused RHS:  [ S | w1 | S @ wl_s | pad ]  ----------------------------
    S = jnp.tile(jnp.eye(E, dtype=jnp.float32), (F, 1))         # (FE, E) feature-sum matrix
    lin_col = jnp.tile(wl_s, (F, 1))                            # (FE, 1) == S @ wl_s
    n_cols = E + H + 1
    Npad = -(-n_cols // 128) * 128
    rhs = jnp.concatenate(
        [S, w1.reshape(FE, H).astype(jnp.float32), lin_col,
         jnp.zeros((FE, Npad - n_cols), jnp.float32)], axis=1)  # (FE, Npad)

    # ---- consolidated small-parameter block ---------------------------------
    vp = jnp.zeros((3, H), jnp.float32)
    vp = vp.at[0, :].set(b1.reshape(H).astype(jnp.float32))     # fc1 bias
    vp = vp.at[1, :].set(w2_row)                                # scaled fc2 weight row
    vp = vp.at[2, 0].set(inter_scale)
    vp = vp.at[2, 1].set(total_bias)

    # ---- VMEM budget (explicit, so v7x's 64 MiB physical is respected) ------
    emb_item = jnp.dtype(emb_dtype).itemsize
    need = (2 * BB * FE * emb_item            # double-buffered emb tiles
            + 2 * BB * 128 * 4                # output tiles (lane-padded estimate)
            + 2 * (FE * Npad + 8 * 128) * 4   # resident weight blocks
            + 6 * BB * Npad * 4)              # in-kernel temporaries
    vmem_limit = int(min(48 * 2 ** 20, max(16 * 2 ** 20, 2 * need)))

    # ---- kernel --------------------------------------------------------------
    def kernel(emb_ref, rhs_ref, vp_ref, out_ref):
        e = emb_ref[...].astype(jnp.float32)                     # (BB, FE)
        fused = jnp.dot(e, rhs_ref[...],
                        preferred_element_type=jnp.float32)      # (BB, Npad)

        sum_emb = fused[:, :E]                                   # (BB, E)
        h = fused[:, E:E + H] + vp_ref[0:1, :]                   # (BB, H)
        lin = fused[:, E + H:E + H + 1]                          # (BB, 1), scaled by wf0

        h = jnp.maximum(h, 0.0)
        dnn = jnp.sum(h * vp_ref[1:2, :], axis=-1, keepdims=True)      # fc2 * wf2

        sq_all = jnp.sum(e * e, axis=-1, keepdims=True)                # rowsum(emb^2)
        inter = jnp.sum(sum_emb * sum_emb, axis=-1, keepdims=True) - sq_all

        out_ref[...] = lin + inter * vp_ref[2:3, 0:1] + dnn + vp_ref[2:3, 1:2]

    fixed = lambda i: (0, 0)
    out = pl.pallas_call(
        kernel,
        out_shape=jax.ShapeDtypeStruct((B_pad, 1), jnp.float32),
        grid=(n_blocks,),
        in_specs=[
            pl.BlockSpec((BB, FE), lambda i: (i, 0)),   # streamed embeddings
            pl.BlockSpec((FE, Npad), fixed),            # fused weight RHS (resident)
            pl.BlockSpec((3, H), fixed),                # consolidated small params
        ],
        out_specs=pl.BlockSpec((BB, 1), lambda i: (i, 0)),
        compiler_params=pltpu.CompilerParams(
            dimension_semantics=("parallel",),
            vmem_limit_bytes=vmem_limit),
    )(emb, rhs, vp)
    return out[:B]


def init_params(key, feature_dim, embedding_dim, hidden_dim):
    E, H, F = embedding_dim, hidden_dim, feature_dim
    ks = jax.random.split(key, 9)
    scale = 0.1
    emb_tbl = scale * jax.random.normal(ks[0], (F, E), jnp.float32)
    wl = scale * jax.random.normal(ks[1], (E, 1), jnp.float32)
    bl = scale * jax.random.normal(ks[2], (1,), jnp.float32)
    w1 = scale * jax.random.normal(ks[3], (F * E, H), jnp.float32)
    b1 = scale * jax.random.normal(ks[4], (H,), jnp.float32)
    w2 = scale * jax.random.normal(ks[5], (H, 1), jnp.float32)
    b2 = scale * jax.random.normal(ks[6], (1,), jnp.float32)
    wf = scale * jax.random.normal(ks[7], (3, 1), jnp.float32)
    bf = scale * jax.random.normal(ks[8], (1,), jnp.float32)
    return (emb_tbl, wl, bl, w1, b1, w2, b2, wf, bf)


def deepfm_reference(x, params, *, embedding_dim, emb_dtype=jnp.float32):
    """Pure-JAX mirror of the PyTorch forward (optionally on rounded embeddings)."""
    emb_tbl, wl, bl, w1, b1, w2, b2, wf, bf = params
    B, F = x.shape
    emb = emb_tbl[x].astype(emb_dtype).astype(jnp.float32)       # (B, F, E)
    sum_emb = jnp.sum(emb, axis=1)                               # (B, E)
    linear_part = sum_emb @ wl + bl                              # (B, 1)
    interaction = 0.5 * jnp.sum(sum_emb ** 2 - jnp.sum(emb ** 2, axis=1),
                                axis=1)                          # (B,)
    dnn_in = emb.reshape(B, F * embedding_dim)
    dnn = jnp.maximum(dnn_in @ w1 + b1, 0.0)
    dnn = dnn @ w2 + b2                                          # (B, 1)
    cat = jnp.concatenate(
        [linear_part, interaction.reshape(-1, 1), dnn.reshape(-1, 1)], axis=1)
    return cat @ wf + bf                                         # (B, 1)


if __name__ == "__main__":
    # Small shapes consistent with the module: x.shape[1] == feature_dim
    # (implied by fc1's feature_dim * embedding_dim input).
    feature_dim = 16
    embedding_dim = 8
    hidden_dim = 32
    batch = 200            # ragged on purpose -> exercises padding, grid >= 2

    key = jax.random.PRNGKey(0)
    kx, kp = jax.random.split(key)
    x = jax.random.randint(kx, (batch, feature_dim), 0, feature_dim,
                           dtype=jnp.int32)
    params = init_params(kp, feature_dim, embedding_dim, hidden_dim)

    # 1) exact-precision path (f32 streaming) vs exact f32 reference
    out_f32 = deepfm_forward(x, params, embedding_dim=embedding_dim,
                             hidden_dim=hidden_dim, emb_dtype=jnp.float32)
    out_f32 = jax.block_until_ready(out_f32)
    ref_f32 = deepfm_reference(x, params, embedding_dim=embedding_dim,
                               emb_dtype=jnp.float32)
    assert out_f32.shape == (batch, 1)
    assert jnp.allclose(out_f32, ref_f32, atol=1e-5, rtol=1e-5), (out_f32, ref_f32)

    # 2) optimized path (bf16 embedding streaming, f32 math in-kernel) vs the
    #    same math on bf16-rounded embeddings
    out_bf16 = deepfm_forward(x, params, embedding_dim=embedding_dim,
                              hidden_dim=hidden_dim, emb_dtype=jnp.bfloat16)
    out_bf16 = jax.block_until_ready(out_bf16)
    ref_bf16 = deepfm_reference(x, params, embedding_dim=embedding_dim,
                                emb_dtype=jnp.bfloat16)
    assert out_bf16.shape == (batch, 1)
    assert jnp.allclose(out_bf16, ref_bf16, atol=1e-4, rtol=1e-4), (out_bf16, ref_bf16)

    print("KERNEL_OK")
</pallas_src>

<mosaic_0001>
module attributes {stable_mosaic.version = 11 : i64} {
  func.func @kernel(%arg0: i32, %arg1: memref<96x128xf32, #tpu.memory_space<vmem>>, %arg2: memref<128x128xf32, #tpu.memory_space<vmem>>, %arg3: memref<3x32xf32, #tpu.memory_space<vmem>>, %arg4: memref<96x1xf32, #tpu.memory_space<vmem>>) attributes {dimension_semantics = [#tpu.dimension_semantics<parallel>], iteration_bounds = array<i64: 3>, scalar_prefetch = 0 : i64, scratch_operands = 0 : i64, tpu.core_type = #tpu.core_type<tc>, window_params = [{transform_indices = @transform_0, window_bounds = array<i64: 96, 128>}, {pipeline_mode = #tpu.pipeline_mode<synchronous>, transform_indices = @transform_1, window_bounds = array<i64: 128, 128>}, {pipeline_mode = #tpu.pipeline_mode<synchronous>, transform_indices = @transform_2, window_bounds = array<i64: 3, 32>}, {transform_indices = @transform_3, window_bounds = array<i64: 96, 1>}]} {
    %c0 = arith.constant 0 : index
    %c0_0 = arith.constant 0 : index
    %0 = vector.load %arg1[%c0, %c0_0] : memref<96x128xf32, #tpu.memory_space<vmem>>, vector<96x128xf32>
    %c0_1 = arith.constant 0 : index
    %c0_2 = arith.constant 0 : index
    %1 = vector.load %arg2[%c0_1, %c0_2] : memref<128x128xf32, #tpu.memory_space<vmem>>, vector<128x128xf32>
    %cst = arith.constant dense<0.000000e+00> : vector<96x128xf32>
    %2 = tpu.matmul %0, %1, %cst {dimension_numbers = #tpu.dot_dimension_numbers<[1], [0], [0], [1], [0, 0, 1, 1], [], []>} : vector<96x128xf32>, vector<128x128xf32>, vector<96x128xf32> -> vector<96x128xf32>
    %3 = vector.extract_strided_slice %2 {offsets = [0, 0], sizes = [96, 8], strides = [1, 1]} : vector<96x128xf32> to vector<96x8xf32>
    %4 = vector.extract_strided_slice %2 {offsets = [0, 8], sizes = [96, 32], strides = [1, 1]} : vector<96x128xf32> to vector<96x32xf32>
    %c0_3 = arith.constant 0 : index
    %c0_4 = arith.constant 0 : index
    %5 = vector.load %arg3[%c0_3, %c0_4] : memref<3x32xf32, #tpu.memory_space<vmem>>, vector<1x32xf32>
    %6 = vector.broadcast %5 : vector<1x32xf32> to vector<96x32xf32>
    %7 = arith.addf %4, %6 : vector<96x32xf32>
    %8 = vector.extract_strided_slice %2 {offsets = [0, 40], sizes = [96, 1], strides = [1, 1]} : vector<96x128xf32> to vector<96x1xf32>
    %cst_5 = arith.constant 0.000000e+00 : f32
    %9 = vector.broadcast %cst_5 : f32 to vector<96x32xf32>
    %10 = arith.maximumf %7, %9 : vector<96x32xf32>
    %c1 = arith.constant 1 : index
    %c0_6 = arith.constant 0 : index
    %11 = vector.load %arg3[%c1, %c0_6] : memref<3x32xf32, #tpu.memory_space<vmem>>, vector<1x32xf32>
    %12 = vector.broadcast %11 : vector<1x32xf32> to vector<96x32xf32>
    %13 = arith.mulf %10, %12 : vector<96x32xf32>
    %cst_7 = arith.constant dense<0.000000e+00> : vector<96xf32>
    %14 = vector.multi_reduction <add>, %13, %cst_7 [1] : vector<96x32xf32> to vector<96xf32>
    %15 = vector.shape_cast %14 : vector<96xf32> to vector<96x1xf32>
    %16 = arith.mulf %0, %0 : vector<96x128xf32>
    %cst_8 = arith.constant dense<0.000000e+00> : vector<96xf32>
    %17 = vector.multi_reduction <add>, %16, %cst_8 [1] : vector<96x128xf32> to vector<96xf32>
    %18 = vector.shape_cast %17 : vector<96xf32> to vector<96x1xf32>
    %19 = arith.mulf %3, %3 : vector<96x8xf32>
    %cst_9 = arith.constant dense<0.000000e+00> : vector<96xf32>
    %20 = vector.multi_reduction <add>, %19, %cst_9 [1] : vector<96x8xf32> to vector<96xf32>
    %21 = vector.shape_cast %20 : vector<96xf32> to vector<96x1xf32>
    %22 = arith.subf %21, %18 : vector<96x1xf32>
    %c2 = arith.constant 2 : index
    %c0_10 = arith.constant 0 : index
    %23 = vector.load %arg3[%c2, %c0_10] : memref<3x32xf32, #tpu.memory_space<vmem>>, vector<1x1xf32>
    %24 = vector.broadcast %23 : vector<1x1xf32> to vector<96x1xf32>
    %25 = arith.mulf %22, %24 : vector<96x1xf32>
    %26 = arith.addf %8, %25 : vector<96x1xf32>
    %27 = arith.addf %26, %15 : vector<96x1xf32>
    %c2_11 = arith.constant 2 : index
    %c1_12 = arith.constant 1 : index
    %28 = vector.load %arg3[%c2_11, %c1_12] : memref<3x32xf32, #tpu.memory_space<vmem>>, vector<1x1xf32>
    %29 = vector.broadcast %28 : vector<1x1xf32> to vector<96x1xf32>
    %30 = arith.addf %27, %29 : vector<96x1xf32>
    %c0_13 = arith.constant 0 : index
    %c0_14 = arith.constant 0 : index
    %31 = vector.load %arg4[%c0_13, %c0_14] : memref<96x1xf32, #tpu.memory_space<vmem>>, vector<96x1xf32>
    tpu.vector_store %arg4[%c0_13, %c0_14], %30 {strides = array<i32>} : memref<96x1xf32, #tpu.memory_space<vmem>>, vector<96x1xf32>,
    return
  }
  func.func @transform_0(%arg0: i32) -> (i32, i32) {
    %c0_i32 = arith.constant 0 : i32
    %c0_i32_0 = arith.constant 0 : i32
    return %arg0, %c0_i32 : i32, i32
  }
  func.func @transform_1(%arg0: i32) -> (i32, i32) {
    %c0_i32 = arith.constant 0 : i32
    %c0_i32_0 = arith.constant 0 : i32
    %c0_i32_1 = arith.constant 0 : i32
    return %c0_i32, %c0_i32_0 : i32, i32
  }
  func.func @transform_2(%arg0: i32) -> (i32, i32) {
    %c0_i32 = arith.constant 0 : i32
    %c0_i32_0 = arith.constant 0 : i32
    %c0_i32_1 = arith.constant 0 : i32
    return %c0_i32, %c0_i32_0 : i32, i32
  }
  func.func @transform_3(%arg0: i32) -> (i32, i32) {
    %c0_i32 = arith.constant 0 : i32
    %c0_i32_0 = arith.constant 0 : i32
    return %arg0, %c0_i32 : i32, i32
  }
}

</mosaic_0001>

<llo_original>
// kernel: tpu_custom_call.1
$region0: #{tpu_custom_call.1}
  #allocation0 [shape = 'u32[]', space=smem, size = 0x4, offset = 0x4, fixed_abs, tag = 'smem constant byte address 0x4 - core index']
  #allocation1 [shape = 'u32[72,128]{1,0:T(1,128)}', space=vmem, size = 0x9000, scoped, tag = 'internal scratch']
  %s0 = inlined_call_operand.hbm [shape: f32[288,128], index: 0, kind: input, shape index: {}]
  %s1 = inlined_call_operand.hbm [shape: f32[128,128], index: 1, kind: input, shape index: {}]
  %s2 = inlined_call_operand.hbm [shape: f32[3,32], index: 2, kind: input, shape index: {}]
  %s3 = inlined_call_operand.vmem [shape: f32[288,1], index: 3, kind: output, shape index: {}]
  %s4 = sld [smem:[#allocation0]]
  $region57: #{tpu_custom_call.1} parent=0
    _
  %s6 = ssub.s32 1, %s4
  %s7 = scalar_select 0, %s6, %s4
  $region1: #{tpu_custom_call.1} parent=0
    #allocation2 [shape = 'u8[98304]{0}', space=vmem, size = 0x18000, scoped, tag = 'input window, operand 0']
    #allocation3 [shape = 's32[2]{0}', space=sflag, size = 0x8, scoped, tag = 'scoped memory for tpu_custom_call.1']
    #allocation4 [shape = 'u8[65536]{0}', space=vmem, size = 0x10000, scoped, tag = 'input window, operand 1, single buffered']
    #allocation5 [shape = 's32[1]{0}', space=sflag, size = 0x4, scoped, tag = 'scoped memory for tpu_custom_call.1']
    #allocation6 [shape = 'u8[2048]{0}', space=vmem, size = 0x800, scoped, tag = 'input window, operand 2, single buffered']
    %8 = vsyncpa [#allocation3], 0
    %s9 = scalar_lea.sflag [#allocation3], 1
    %10 = vsyncpa %s9, 0
    %11 = vsyncpa [#allocation5], 0
    loop: start=0, step=1, limit=5
    $region2: #{tpu_custom_call.1} parent=1 // loop_pre_header
      _
    $region3: #{tpu_custom_call.1} parent=1 // loop_header
      %s13 = sphi 0, %s17
      %p14 = scmp.ge.s32.totalorder %s13, 5
      %s23 = sphi 0, %s25
      %s26 = sphi 0, %s23
      %s27 = sphi 0, %s26
      %s43 = sphi 0, %s27
      %s47 = sphi 0, %s47
      %s49 = sphi 0, %s47
      %s50 = sphi 0, %s49
      %s64 = sphi 0, %s50
      %s68 = sphi 0, %s68
      %s70 = sphi 0, %s68
      %s71 = sphi 0, %s70
      %s85 = sphi 0, %s71
      %s91 = sphi 0, %s93
      %s94 = sphi 0, %s91
      %s95 = sphi 0, %s94
      %s111 = sphi 0, %s95
    $region4: #{tpu_custom_call.1} parent=1 // loop_header_branch
      %16 = sbr.rel (%p14) target = $region8
    $region5: #{tpu_custom_call.1} parent=1 // loop_body
      %s18 = ssub.s32 %s13, 1
      %s19 = ssub.s32 %s13, 2
      %s20 = sadd.s32 %s13, 1
      %s21 = ssub.s32 %s13, %s20
      %p22 = scmp.eq.s32.totalorder %s21, 0
      %s24 = sadd.s32 %s23, 1
      %s25 = scalar_select %p22, %s23, %s24
      %p28 = pneg %p22
      %p29 = scmp.eq.s32.totalorder %s13, 2
      %p30 = por %p28, %p29
      %p31 = scmp.ne.s32.totalorder %s23, %s26
      %p32 = scmp.eq.s32.totalorder %s13, 0
      %p33 = por %p31, %p32
      %p34 = scmp.ne.s32.totalorder %s23, %s26
      %p35 = scmp.eq.s32.totalorder %s18, 2
      %p36 = por %p34, %p35
      %p37 = scmp.ne.s32.totalorder %s26, %s27
      %p38 = scmp.eq.s32.totalorder %s18, 0
      %p39 = por %p37, %p38
      %p40 = scmp.ne.s32.totalorder %s26, %s27
      %p41 = scmp.eq.s32.totalorder %s19, 2
      %p42 = por %p40, %p41
      %p44 = scmp.ne.s32.totalorder %s27, %s43
      %p45 = scmp.eq.s32.totalorder %s19, 0
      %p46 = por %p44, %p45
      %s48 = sadd.s32 %s47, 1
      %p51 = scmp.eq.s32.totalorder %s13, 2
      %p52 = scmp.ne.s32.totalorder %s47, %s49
      %p53 = scmp.eq.s32.totalorder %s13, 0
      %p54 = por %p52, %p53
      %p55 = scmp.ne.s32.totalorder %s47, %s49
      %p56 = scmp.eq.s32.totalorder %s18, 2
      %p57 = por %p55, %p56
      %p58 = scmp.ne.s32.totalorder %s49, %s50
      %p59 = scmp.eq.s32.totalorder %s18, 0
      %p60 = por %p58, %p59
      %p61 = scmp.ne.s32.totalorder %s49, %s50
      %p62 = scmp.eq.s32.totalorder %s19, 2
      %p63 = por %p61, %p62
      %p65 = scmp.ne.s32.totalorder %s50, %s64
      %p66 = scmp.eq.s32.totalorder %s19, 0
      %p67 = por %p65, %p66
      %s69 = sadd.s32 %s68, 1
      %p72 = scmp.eq.s32.totalorder %s13, 2
      %p73 = scmp.ne.s32.totalorder %s68, %s70
      %p74 = scmp.eq.s32.totalorder %s13, 0
      %p75 = por %p73, %p74
      %p76 = scmp.ne.s32.totalorder %s68, %s70
      %p77 = scmp.eq.s32.totalorder %s18, 2
      %p78 = por %p76, %p77
      %p79 = scmp.ne.s32.totalorder %s70, %s71
      %p80 = scmp.eq.s32.totalorder %s18, 0
      %p81 = por %p79, %p80
      %p82 = scmp.ne.s32.totalorder %s70, %s71
      %p83 = scmp.eq.s32.totalorder %s19, 2
      %p84 = por %p82, %p83
      %p86 = scmp.ne.s32.totalorder %s71, %s85
      %p87 = scmp.eq.s32.totalorder %s19, 0
      %p88 = por %p86, %p87
      %s89 = ssub.s32 %s13, %s20
      %p90 = scmp.eq.s32.totalorder %s89, 0
      %s92 = sadd.s32 %s91, 1
      %s93 = scalar_select %p90, %s91, %s92
      %p96 = pneg %p90
      %p97 = scmp.eq.s32.totalorder %s13, 2
      %p98 = por %p96, %p97
      %p99 = scmp.ne.s32.totalorder %s91, %s94
      %p100 = scmp.eq.s32.totalorder %s13, 0
      %p101 = por %p99, %p100
      %p102 = scmp.ne.s32.totalorder %s91, %s94
      %p103 = scmp.eq.s32.totalorder %s18, 2
      %p104 = por %p102, %p103
      %p105 = scmp.ne.s32.totalorder %s94, %s95
      %p106 = scmp.eq.s32.totalorder %s18, 0
      %p107 = por %p105, %p106
      %p108 = scmp.ne.s32.totalorder %s94, %s95
      %p109 = scmp.eq.s32.totalorder %s19, 2
      %p110 = por %p108, %p109
      %p112 = scmp.ne.s32.totalorder %s95, %s111
      %p113 = scmp.eq.s32.totalorder %s19, 0
      %p114 = por %p112, %p113
      %p115 = scmp.le.s32.totalorder 1, %s13
      %p116 = scmp.lt.s32.totalorder %s13, 4
      %p117 = pnand %p115, %p116
      %p118 = pneg %p117
      // Predicated region
      $region9: #{tpu_custom_call.1} parent=5 // pred_check
        _
      $region10: #{tpu_custom_call.1} parent=5 // pred_check_branch
        %120 = sbr.rel (%p117) target = $region12
      $region11: #{tpu_custom_call.1} parent=5 // pred_region
        %s121 = ssub.s32 %s13, 1
        // Predicated region
        $region13: #{tpu_custom_call.1} parent=11 // pred_check
          %p122 = pneg %p60
        $region14: #{tpu_custom_call.1} parent=11 // pred_check_branch
          %124 = sbr.rel (%p122) target = $region16
        $region15: #{tpu_custom_call.1} parent=11 // pred_region
          %126 = vsyncadd [#allocation5], 0
          %s127 = sshll.u32 %s1, 4
          %s128 = int_to_ptr.hbm [resolvable:$true] %s127
          %s129 = sshll.u32 [#allocation4], 4
          %s130 = int_to_ptr.vmem [resolvable:$true] %s129
          %135 = dma.hbm_to_vmem [thread:$0]  %s128, 2048, %s130, [#allocation5], 128, 128, 8
        $region16: #{tpu_custom_call.1} parent=11 // pred_fallthru
          _
        // Predicated region
        $region17: #{tpu_custom_call.1} parent=11 // pred_check
          %p136 = pneg %p81
        $region18: #{tpu_custom_call.1} parent=11 // pred_check_branch
          %138 = sbr.rel (%p136) target = $region20
        $region19: #{tpu_custom_call.1} parent=11 // pred_region
          %140 = vsyncadd [#allocation5], 0
          %s142 = sshll.u32 %s2, 4
          %s143 = int_to_ptr.hbm [resolvable:$true] %s142
          %s144 = sshll.u32 [#allocation6], 4
          %s145 = int_to_ptr.vmem [resolvable:$true] %s144
          %147 = dma.hbm_to_vmem [thread:$0]  %s143, 64, %s145, [#allocation5]
        $region20: #{tpu_custom_call.1} parent=11 // pred_fallthru
          _
      $region12: #{tpu_custom_call.1} parent=5 // pred_fallthru
        _
      %p148 = scmp.lt.s32.totalorder %s13, 3
      // Predicated region
      $region21: #{tpu_custom_call.1} parent=5 // pred_check
        %p149 = pneg %p148
      $region22: #{tpu_custom_call.1} parent=5 // pred_check_branch
        %151 = sbr.rel (%p149) target = $region24
      $region23: #{tpu_custom_call.1} parent=5 // pred_region
        // Predicated region
        $region25: #{tpu_custom_call.1} parent=23 // pred_check
          %p152 = pneg %p33
        $region26: #{tpu_custom_call.1} parent=23 // pred_check_branch
          %154 = sbr.rel (%p152) target = $region28
        $region27: #{tpu_custom_call.1} parent=23 // pred_region
          %s155 = sand.u32 %s23, 1
          %s156 = scalar_lea.sflag [#allocation3], %s155
          %s157 = sand.u32 %s23, 1
          %s158 = smul.addr %s157, 96
          %s159 = scalar_lea.vmem [#allocation2], %s158
          %s160 = smul.u32 12, %s13
          %162 = vsyncadd %s156, 0
          %s163 = smul.addr %s160, 8
          %s164 = scalar_lea.hbm %s0, %s163
          %s165 = sshll.u32 %s164, 4
          %s166 = int_to_ptr.hbm [resolvable:$true] %s165
          %s167 = sshll.u32 %s159, 4
          %s168 = int_to_ptr.vmem [resolvable:$true] %s167
          %173 = dma.hbm_to_vmem [thread:$0]  %s166, 1536, %s168, %s156, 128, 128, 8
        $region28: #{tpu_custom_call.1} parent=23 // pred_fallthru
          _
      $region24: #{tpu_custom_call.1} parent=5 // pred_fallthru
        _
      %p174 = scmp.le.s32.totalorder 1, %s13
      %p175 = scmp.lt.s32.totalorder %s13, 4
      %p176 = pnand %p174, %p175
      %p177 = pneg %p176
      // Predicated region
      $region29: #{tpu_custom_call.1} parent=5 // pred_check
        _
      $region30: #{tpu_custom_call.1} parent=5 // pred_check_branch
        %179 = sbr.rel (%p176) target = $region32
      $region31: #{tpu_custom_call.1} parent=5 // pred_region
        %s180 = ssub.s32 %s13, 1
        %s181 = sand.u32 %s26, 1
        %s182 = scalar_lea.sflag [#allocation3], %s181
        %s183 = sand.u32 %s26, 1
        %s184 = smul.addr %s183, 96
        %s185 = scalar_lea.vmem [#allocation2], %s184
        // Predicated region
        $region33: #{tpu_custom_call.1} parent=31 // pred_check
          %p186 = pneg %p39
        $region34: #{tpu_custom_call.1} parent=31 // pred_check_branch
          %188 = sbr.rel (%p186) target = $region36
        $region35: #{tpu_custom_call.1} parent=31 // pred_region
          %190 = dma.done %s182, 1536
        $region36: #{tpu_custom_call.1} parent=31 // pred_fallthru
          _
        // Predicated region
        $region37: #{tpu_custom_call.1} parent=31 // pred_check
          %p191 = pneg %p60
        $region38: #{tpu_custom_call.1} parent=31 // pred_check_branch
          %193 = sbr.rel (%p191) target = $region40
        $region39: #{tpu_custom_call.1} parent=31 // pred_region
          %195 = dma.done [#allocation5], 2048
        $region40: #{tpu_custom_call.1} parent=31 // pred_fallthru
          _
        // Predicated region
        $region41: #{tpu_custom_call.1} parent=31 // pred_check
          %p196 = pneg %p81
        $region42: #{tpu_custom_call.1} parent=31 // pred_check_branch
          %198 = sbr.rel (%p196) target = $region44
        $region43: #{tpu_custom_call.1} parent=31 // pred_region
          %200 = dma.done [#allocation5], 64
        $region44: #{tpu_custom_call.1} parent=31 // pred_fallthru
          _
        %s201 = sand.u32 %s26, 1
        %s202 = scalar_lea.sflag [#allocation3], %s201
        %s203 = sand.u32 %s26, 1
        %s204 = smul.addr %s203, 96
        %s205 = scalar_lea.vmem [#allocation2], %s204
        %p206 = pneg %p39
        %p207 = pneg %p36
        %p208 = pneg %p60
        %p209 = pneg %p57
        %p210 = pneg %p81
        %p211 = pneg %p78
        %p212 = pneg %p107
        %p213 = pneg %p104
        %s214 = smul.u32 12, %s18
        %p215 = scmp.lt.s32.totalorder %s214, 35
        %s216 = scalar_select %p215, %s214, 35
        %s217 = smul.addr %s216, 8
        %s218 = scalar_lea.vmem %s3, %s217
        %s219 = smul.u32 12, %s18
        %s220 = smul.u32 12, %s18
        %p221 = scmp.lt.s32.totalorder %s220, 35
        %s222 = scalar_select %p221, %s220, 35
        %s223 = smul.addr %s222, 8
        %s224 = scalar_lea.vmem %s3, %s223
        %s225 = smul.u32 12, %s18
        %v226 = vld [vmem:[%s185] sm:$0xff]
        %v227 = vld [vmem:[%s185 + $0x8] sm:$0xff]
        %v228 = vld [vmem:[%s185 + $0x10] sm:$0xff]
        %v229 = vld [vmem:[%s185 + $0x18] sm:$0xff]
        %v230 = vld [vmem:[%s185 + $0x20] sm:$0xff]
        %v231 = vld [vmem:[%s185 + $0x28] sm:$0xff]
        %v232 = vld [vmem:[%s185 + $0x30] sm:$0xff]
        %v233 = vld [vmem:[%s185 + $0x38] sm:$0xff]
        %v234 = vld [vmem:[%s185 + $0x40] sm:$0xff]
        %v235 = vld [vmem:[%s185 + $0x48] sm:$0xff]
        %v236 = vld [vmem:[%s185 + $0x50] sm:$0xff]
        %v237 = vld [vmem:[%s185 + $0x58] sm:$0xff]
        %v238 = vld [vmem:[#allocation4] sm:$0xff]
        %v239 = vld [vmem:[#allocation4 + $0x8] sm:$0xff]
        %v240 = vld [vmem:[#allocation4 + $0x10] sm:$0xff]
        %v241 = vld [vmem:[#allocation4 + $0x18] sm:$0xff]
        %v242 = vld [vmem:[#allocation4 + $0x20] sm:$0xff]
        %v243 = vld [vmem:[#allocation4 + $0x28] sm:$0xff]
        %v244 = vld [vmem:[#allocation4 + $0x30] sm:$0xff]
        %v245 = vld [vmem:[#allocation4 + $0x38] sm:$0xff]
        %v246 = vld [vmem:[#allocation4 + $0x40] sm:$0xff]
        %v247 = vld [vmem:[#allocation4 + $0x48] sm:$0xff]
        %v248 = vld [vmem:[#allocation4 + $0x50] sm:$0xff]
        %v249 = vld [vmem:[#allocation4 + $0x58] sm:$0xff]
        %v250 = vld [vmem:[#allocation4 + $0x60] sm:$0xff]
        %v251 = vld [vmem:[#allocation4 + $0x68] sm:$0xff]
        %v252 = vld [vmem:[#allocation4 + $0x70] sm:$0xff]
        %v253 = vld [vmem:[#allocation4 + $0x78] sm:$0xff]
        %254 = vmatpush.msra.mxu0 %v253
        %255 = vmatpush.msra.mxu0 %v252
        %256 = vmatpush.msra.mxu0 %v251
        %257 = vmatpush.msra.mxu0 %v250
        %258 = vmatpush.msra.mxu0 %v249
        %259 = vmatpush.msra.mxu0 %v248
        %260 = vmatpush.msra.mxu0 %v247
        %261 = vmatpush.msra.mxu0 %v246
        %262 = vmatpush.msra.mxu0 %v245
        %263 = vmatpush.msra.mxu0 %v244
        %264 = vmatpush.msra.mxu0 %v243
        %265 = vmatpush.msra.mxu0 %v242
        %266 = vmatpush.msra.mxu0 %v241
        %267 = vmatpush.msra.mxu0 %v240
        %268 = vmatpush.msra.mxu0 %v239
        %269 = vmatpush.msra.mxu0 %v238
        %270 = vmatmul.f32.gmra.mxu0 %v226
        %v271 = vpop.f32.mrf.mxu0
        %v272 = vadd.f32 0.0, %v271
        %273 = vmatmul.f32.gmra.mxu0 %v227
        %v274 = vpop.f32.mrf.mxu0
        %v275 = vadd.f32 0.0, %v274
        %276 = vmatmul.f32.gmra.mxu0 %v228
        %v277 = vpop.f32.mrf.mxu0
        %v278 = vadd.f32 0.0, %v277
        %279 = vmatmul.f32.gmra.mxu0 %v229
        %v280 = vpop.f32.mrf.mxu0
        %v281 = vadd.f32 0.0, %v280
        %282 = vmatmul.f32.gmra.mxu0 %v230
        %v283 = vpop.f32.mrf.mxu0
        %v284 = vadd.f32 0.0, %v283
        %285 = vmatmul.f32.gmra.mxu0 %v231
        %v286 = vpop.f32.mrf.mxu0
        %v287 = vadd.f32 0.0, %v286
        %288 = vmatmul.f32.gmra.mxu0 %v232
        %v289 = vpop.f32.mrf.mxu0
        %v290 = vadd.f32 0.0, %v289
        %291 = vmatmul.f32.gmra.mxu0 %v233
        %v292 = vpop.f32.mrf.mxu0
        %v293 = vadd.f32 0.0, %v292
        %294 = vmatmul.f32.gmra.mxu0 %v234
        %v295 = vpop.f32.mrf.mxu0
        %v296 = vadd.f32 0.0, %v295
        %297 = vmatmul.f32.gmra.mxu0 %v235
        %v298 = vpop.f32.mrf.mxu0
        %v299 = vadd.f32 0.0, %v298
        %300 = vmatmul.f32.gmra.mxu0 %v236
        %v301 = vpop.f32.mrf.mxu0
        %v302 = vadd.f32 0.0, %v301
        %303 = vmatmul.f32.gmra.mxu0 %v237
        %v304 = vpop.f32.mrf.mxu0
        %v305 = vadd.f32 0.0, %v304
        %306 = vdwg.mxu0
        %v307 = vld [vmem:[#allocation6] sm:$0x1]
        %v308 = vperm.slane %v307, 0
        %310 = vrot.lane.b32.xlu0 %v308, 8
        %v311 = vpop.permute.xlu0 %310
        %v313 = vadd.f32 %v272, %v311
        %v314 = vadd.f32 %v275, %v311
        %v315 = vadd.f32 %v278, %v311
        %v316 = vadd.f32 %v281, %v311
        %v317 = vadd.f32 %v284, %v311
        %v318 = vadd.f32 %v287, %v311
        %v319 = vadd.f32 %v290, %v311
        %v320 = vadd.f32 %v293, %v311
        %v321 = vadd.f32 %v296, %v311
        %v322 = vadd.f32 %v299, %v311
        %v323 = vadd.f32 %v302, %v311
        %v324 = vadd.f32 %v305, %v311
        %v325 = vmax.f32 %v313, 0.0
        %v326 = vmax.f32 %v314, 0.0
        %v327 = vmax.f32 %v315, 0.0
        %v328 = vmax.f32 %v316, 0.0
        %v329 = vmax.f32 %v317, 0.0
        %v330 = vmax.f32 %v318, 0.0
        %v331 = vmax.f32 %v319, 0.0
        %v332 = vmax.f32 %v320, 0.0
        %v333 = vmax.f32 %v321, 0.0
        %v334 = vmax.f32 %v322, 0.0
        %v335 = vmax.f32 %v323, 0.0
        %v336 = vmax.f32 %v324, 0.0
        %v337 = vld [vmem:[#allocation6 + $0x1] sm:$0x1]
        %v338 = vperm.slane %v337, 0
        %340 = vrot.lane.b32.xlu0 %v338, 8
        %v341 = vpop.permute.xlu0 %340
        %v343 = vmul.f32 %v325, %v341
        %v344 = vmul.f32 %v326, %v341
        %v345 = vmul.f32 %v327, %v341
        %v346 = vmul.f32 %v328, %v341
        %v347 = vmul.f32 %v329, %v341
        %v348 = vmul.f32 %v330, %v341
        %v349 = vmul.f32 %v331, %v341
        %v350 = vmul.f32 %v332, %v341
        %v351 = vmul.f32 %v333, %v341
        %v352 = vmul.f32 %v334, %v341
        %v353 = vmul.f32 %v335, %v341
        %v354 = vmul.f32 %v336, %v341
        %367 = vrot.lane.b32.xlu0 %v343, 120
        %v368 = vpop.permute.xlu0 %367
        %369 = vrot.lane.b32.xlu0 %v344, 120
        %v370 = vpop.permute.xlu0 %369
        %371 = vrot.lane.b32.xlu0 %v345, 120
        %v372 = vpop.permute.xlu0 %371
        %373 = vrot.lane.b32.xlu0 %v346, 120
        %v374 = vpop.permute.xlu0 %373
        %375 = vrot.lane.b32.xlu0 %v347, 120
        %v376 = vpop.permute.xlu0 %375
        %377 = vrot.lane.b32.xlu0 %v348, 120
        %v378 = vpop.permute.xlu0 %377
        %379 = vrot.lane.b32.xlu0 %v349, 120
        %v380 = vpop.permute.xlu0 %379
        %381 = vrot.lane.b32.xlu0 %v350, 120
        %v382 = vpop.permute.xlu0 %381
        %383 = vrot.lane.b32.xlu0 %v351, 120
        %v384 = vpop.permute.xlu0 %383
        %385 = vrot.lane.b32.xlu0 %v352, 120
        %v386 = vpop.permute.xlu0 %385
        %387 = vrot.lane.b32.xlu0 %v353, 120
        %v388 = vpop.permute.xlu0 %387
        %389 = vrot.lane.b32.xlu0 %v354, 120
        %v390 = vpop.permute.xlu0 %389
        %vm403 = vcmask 261120
        %v404 = vsel %vm403, %v368, 0.0
        %405 = vadd.xlane.f32.xlu0 %v404
        %v406 = vpop.xlane.xlu0 %405
        %v407 = vsel %vm403, %v370, 0.0
        %408 = vadd.xlane.f32.xlu0 %v407
        %v409 = vpop.xlane.xlu0 %408
        %v410 = vsel %vm403, %v372, 0.0
        %411 = vadd.xlane.f32.xlu0 %v410
        %v412 = vpop.xlane.xlu0 %411
        %v413 = vsel %vm403, %v374, 0.0
        %414 = vadd.xlane.f32.xlu0 %v413
        %v415 = vpop.xlane.xlu0 %414
        %v416 = vsel %vm403, %v376, 0.0
        %417 = vadd.xlane.f32.xlu0 %v416
        %v418 = vpop.xlane.xlu0 %417
        %v419 = vsel %vm403, %v378, 0.0
        %420 = vadd.xlane.f32.xlu0 %v419
        %v421 = vpop.xlane.xlu0 %420
        %v422 = vsel %vm403, %v380, 0.0
        %423 = vadd.xlane.f32.xlu0 %v422
        %v424 = vpop.xlane.xlu0 %423
        %v425 = vsel %vm403, %v382, 0.0
        %426 = vadd.xlane.f32.xlu0 %v425
        %v427 = vpop.xlane.xlu0 %426
        %v428 = vsel %vm403, %v384, 0.0
        %429 = vadd.xlane.f32.xlu0 %v428
        %v430 = vpop.xlane.xlu0 %429
        %v431 = vsel %vm403, %v386, 0.0
        %432 = vadd.xlane.f32.xlu0 %v431
        %v433 = vpop.xlane.xlu0 %432
        %v434 = vsel %vm403, %v388, 0.0
        %435 = vadd.xlane.f32.xlu0 %v434
        %v436 = vpop.xlane.xlu0 %435
        %v437 = vsel %vm403, %v390, 0.0
        %438 = vadd.xlane.f32.xlu0 %v437
        %v439 = vpop.xlane.xlu0 %438
        %v440 = vmul.f32 %v226, %v226
        %v441 = vmul.f32 %v227, %v227
        %v442 = vmul.f32 %v228, %v228
        %v443 = vmul.f32 %v229, %v229
        %v444 = vmul.f32 %v230, %v230
        %v445 = vmul.f32 %v231, %v231
        %v446 = vmul.f32 %v232, %v232
        %v447 = vmul.f32 %v233, %v233
        %v448 = vmul.f32 %v234, %v234
        %v449 = vmul.f32 %v235, %v235
        %v450 = vmul.f32 %v236, %v236
        %v451 = vmul.f32 %v237, %v237
        %452 = vadd.xlane.f32.xlu0 %v440
        %v453 = vpop.xlane.xlu0 %452
        %454 = vadd.xlane.f32.xlu0 %v441
        %v455 = vpop.xlane.xlu0 %454
        %456 = vadd.xlane.f32.xlu0 %v442
        %v457 = vpop.xlane.xlu0 %456
        %458 = vadd.xlane.f32.xlu0 %v443
        %v459 = vpop.xlane.xlu0 %458
        %460 = vadd.xlane.f32.xlu0 %v444
        %v461 = vpop.xlane.xlu0 %460
        %462 = vadd.xlane.f32.xlu0 %v445
        %v463 = vpop.xlane.xlu0 %462
        %464 = vadd.xlane.f32.xlu0 %v446
        %v465 = vpop.xlane.xlu0 %464
        %466 = vadd.xlane.f32.xlu0 %v447
        %v467 = vpop.xlane.xlu0 %466
        %468 = vadd.xlane.f32.xlu0 %v448
        %v469 = vpop.xlane.xlu0 %468
        %470 = vadd.xlane.f32.xlu0 %v449
        %v471 = vpop.xlane.xlu0 %470
        %472 = vadd.xlane.f32.xlu0 %v450
        %v473 = vpop.xlane.xlu0 %472
        %474 = vadd.xlane.f32.xlu0 %v451
        %v475 = vpop.xlane.xlu0 %474
        %v476 = vmul.f32 %v272, %v272
        %v477 = vmul.f32 %v275, %v275
        %v478 = vmul.f32 %v278, %v278
        %v479 = vmul.f32 %v281, %v281
        %v480 = vmul.f32 %v284, %v284
        %v481 = vmul.f32 %v287, %v287
        %v482 = vmul.f32 %v290, %v290
        %v483 = vmul.f32 %v293, %v293
        %v484 = vmul.f32 %v296, %v296
        %v485 = vmul.f32 %v299, %v299
        %v486 = vmul.f32 %v302, %v302
        %v487 = vmul.f32 %v305, %v305
        %vm488 = vcmask 64512
        %v489 = vsel %vm488, %v476, 0.0
        %490 = vadd.xlane.f32.xlu0 %v489
        %v491 = vpop.xlane.xlu0 %490
        %v492 = vsel %vm488, %v477, 0.0
        %493 = vadd.xlane.f32.xlu0 %v492
        %v494 = vpop.xlane.xlu0 %493
        %v495 = vsel %vm488, %v478, 0.0
        %496 = vadd.xlane.f32.xlu0 %v495
        %v497 = vpop.xlane.xlu0 %496
        %v498 = vsel %vm488, %v479, 0.0
        %499 = vadd.xlane.f32.xlu0 %v498
        %v500 = vpop.xlane.xlu0 %499
        %v501 = vsel %vm488, %v480, 0.0
        %502 = vadd.xlane.f32.xlu0 %v501
        %v503 = vpop.xlane.xlu0 %502
        %v504 = vsel %vm488, %v481, 0.0
        %505 = vadd.xlane.f32.xlu0 %v504
        %v506 = vpop.xlane.xlu0 %505
        %v507 = vsel %vm488, %v482, 0.0
        %508 = vadd.xlane.f32.xlu0 %v507
        %v509 = vpop.xlane.xlu0 %508
        %v510 = vsel %vm488, %v483, 0.0
        %511 = vadd.xlane.f32.xlu0 %v510
        %v512 = vpop.xlane.xlu0 %511
        %v513 = vsel %vm488, %v484, 0.0
        %514 = vadd.xlane.f32.xlu0 %v513
        %v515 = vpop.xlane.xlu0 %514
        %v516 = vsel %vm488, %v485, 0.0
        %517 = vadd.xlane.f32.xlu0 %v516
        %v518 = vpop.xlane.xlu0 %517
        %v519 = vsel %vm488, %v486, 0.0
        %520 = vadd.xlane.f32.xlu0 %v519
        %v521 = vpop.xlane.xlu0 %520
        %v522 = vsel %vm488, %v487, 0.0
        %523 = vadd.xlane.f32.xlu0 %v522
        %v524 = vpop.xlane.xlu0 %523
        %v525 = vsub.f32 %v491, %v453
        %v526 = vsub.f32 %v494, %v455
        %v527 = vsub.f32 %v497, %v457
        %v528 = vsub.f32 %v500, %v459
        %v529 = vsub.f32 %v503, %v461
        %v530 = vsub.f32 %v506, %v463
        %v531 = vsub.f32 %v509, %v465
        %v532 = vsub.f32 %v512, %v467
        %v533 = vsub.f32 %v515, %v469
        %v534 = vsub.f32 %v518, %v471
        %v535 = vsub.f32 %v521, %v473
        %v536 = vsub.f32 %v524, %v475
        %v537 = vld [vmem:[#allocation6 + $0x2] sm:$0x1]
        %v538 = vperm.slane %v537, 0
        %v539 = vmul.f32 %v525, %v538
        %v540 = vmul.f32 %v526, %v538
        %v541 = vmul.f32 %v527, %v538
        %v542 = vmul.f32 %v528, %v538
        %v543 = vmul.f32 %v529, %v538
        %v544 = vmul.f32 %v530, %v538
        %v545 = vmul.f32 %v531, %v538
        %v546 = vmul.f32 %v532, %v538
        %v547 = vmul.f32 %v533, %v538
        %v548 = vmul.f32 %v534, %v538
        %v549 = vmul.f32 %v535, %v538
        %v550 = vmul.f32 %v536, %v538
        %563 = vrot.lane.b32.xlu0 %v539, 40
        %v564 = vpop.permute.xlu0 %563
        %565 = vrot.lane.b32.xlu0 %v540, 40
        %v566 = vpop.permute.xlu0 %565
        %567 = vrot.lane.b32.xlu0 %v541, 40
        %v568 = vpop.permute.xlu0 %567
        %569 = vrot.lane.b32.xlu0 %v542, 40
        %v570 = vpop.permute.xlu0 %569
        %571 = vrot.lane.b32.xlu0 %v543, 40
        %v572 = vpop.permute.xlu0 %571
        %573 = vrot.lane.b32.xlu0 %v544, 40
        %v574 = vpop.permute.xlu0 %573
        %575 = vrot.lane.b32.xlu0 %v545, 40
        %v576 = vpop.permute.xlu0 %575
        %577 = vrot.lane.b32.xlu0 %v546, 40
        %v578 = vpop.permute.xlu0 %577
        %579 = vrot.lane.b32.xlu0 %v547, 40
        %v580 = vpop.permute.xlu0 %579
        %581 = vrot.lane.b32.xlu0 %v548, 40
        %v582 = vpop.permute.xlu0 %581
        %583 = vrot.lane.b32.xlu0 %v549, 40
        %v584 = vpop.permute.xlu0 %583
        %585 = vrot.lane.b32.xlu0 %v550, 40
        %v586 = vpop.permute.xlu0 %585
        %v599 = vadd.f32 %v272, %v564
        %v600 = vadd.f32 %v275, %v566
        %v601 = vadd.f32 %v278, %v568
        %v602 = vadd.f32 %v281, %v570
        %v603 = vadd.f32 %v284, %v572
        %v604 = vadd.f32 %v287, %v574
        %v605 = vadd.f32 %v290, %v576
        %v606 = vadd.f32 %v293, %v578
        %v607 = vadd.f32 %v296, %v580
        %v608 = vadd.f32 %v299, %v582
        %v609 = vadd.f32 %v302, %v584
        %v610 = vadd.f32 %v305, %v586
        %v611 = vadd.f32 %v599, %v406
        %v612 = vadd.f32 %v600, %v409
        %v613 = vadd.f32 %v601, %v412
        %v614 = vadd.f32 %v602, %v415
        %v615 = vadd.f32 %v603, %v418
        %v616 = vadd.f32 %v604, %v421
        %v617 = vadd.f32 %v605, %v424
        %v618 = vadd.f32 %v606, %v427
        %v619 = vadd.f32 %v607, %v430
        %v620 = vadd.f32 %v608, %v433
        %v621 = vadd.f32 %v609, %v436
        %v622 = vadd.f32 %v610, %v439
        %624 = vrot.lane.b32.xlu0 %v538, 39
        %v625 = vpop.permute.xlu0 %624
        %v627 = vadd.f32 %v611, %v625
        %v628 = vadd.f32 %v612, %v625
        %v629 = vadd.f32 %v613, %v625
        %v630 = vadd.f32 %v614, %v625
        %v631 = vadd.f32 %v615, %v625
        %v632 = vadd.f32 %v616, %v625
        %v633 = vadd.f32 %v617, %v625
        %v634 = vadd.f32 %v618, %v625
        %v635 = vadd.f32 %v619, %v625
        %v636 = vadd.f32 %v620, %v625
        %v637 = vadd.f32 %v621, %v625
        %v638 = vadd.f32 %v622, %v625
        %651 = vrot.lane.b32.xlu0 %v627, 88
        %v652 = vpop.permute.xlu0 %651
        %653 = vrot.lane.b32.xlu0 %v628, 88
        %v654 = vpop.permute.xlu0 %653
        %655 = vrot.lane.b32.xlu0 %v629, 88
        %v656 = vpop.permute.xlu0 %655
        %657 = vrot.lane.b32.xlu0 %v630, 88
        %v658 = vpop.permute.xlu0 %657
        %659 = vrot.lane.b32.xlu0 %v631, 88
        %v660 = vpop.permute.xlu0 %659
        %661 = vrot.lane.b32.xlu0 %v632, 88
        %v662 = vpop.permute.xlu0 %661
        %663 = vrot.lane.b32.xlu0 %v633, 88
        %v664 = vpop.permute.xlu0 %663
        %665 = vrot.lane.b32.xlu0 %v634, 88
        %v666 = vpop.permute.xlu0 %665
        %667 = vrot.lane.b32.xlu0 %v635, 88
        %v668 = vpop.permute.xlu0 %667
        %669 = vrot.lane.b32.xlu0 %v636, 88
        %v670 = vpop.permute.xlu0 %669
        %671 = vrot.lane.b32.xlu0 %v637, 88
        %v672 = vpop.permute.xlu0 %671
        %673 = vrot.lane.b32.xlu0 %v638, 88
        %v674 = vpop.permute.xlu0 %673
        %vm687 = vcmask 7168
        %688 = vst.msk [vmem:[%s224] sm:$0xff] %vm687, %v652
        %689 = vst.msk [vmem:[%s224 + $0x8] sm:$0xff] %vm687, %v654
        %690 = vst.msk [vmem:[%s224 + $0x10] sm:$0xff] %vm687, %v656
        %691 = vst.msk [vmem:[%s224 + $0x18] sm:$0xff] %vm687, %v658
        %692 = vst.msk [vmem:[%s224 + $0x20] sm:$0xff] %vm687, %v660
        %693 = vst.msk [vmem:[%s224 + $0x28] sm:$0xff] %vm687, %v662
        %694 = vst.msk [vmem:[%s224 + $0x30] sm:$0xff] %vm687, %v664
        %695 = vst.msk [vmem:[%s224 + $0x38] sm:$0xff] %vm687, %v666
        %696 = vst.msk [vmem:[%s224 + $0x40] sm:$0xff] %vm687, %v668
        %697 = vst.msk [vmem:[%s224 + $0x48] sm:$0xff] %vm687, %v670
        %698 = vst.msk [vmem:[%s224 + $0x50] sm:$0xff] %vm687, %v672
        %699 = vst.msk [vmem:[%s224 + $0x58] sm:$0xff] %vm687, %v674
        %s700 = smul.u32 12, %s18
        %p701 = scmp.lt.s32.totalorder %s700, 35
        %s702 = scalar_select %p701, %s700, 35
        %s703 = smul.addr %s702, 8
        %s704 = scalar_lea.vmem %s3, %s703
        // Predicated region
        $region45: #{tpu_custom_call.1} parent=31 // pred_check
          %p705 = pneg %p104
        $region46: #{tpu_custom_call.1} parent=31 // pred_check_branch
          %707 = sbr.rel (%p705) target = $region48
        $region47: #{tpu_custom_call.1} parent=31 // pred_region
          %s708 = smul.u32 12, %s18
        $region48: #{tpu_custom_call.1} parent=31 // pred_fallthru
          _
      $region32: #{tpu_custom_call.1} parent=5 // pred_fallthru
        _
      %p709 = scmp.le.s32.totalorder 2, %s13
      // Predicated region
      $region49: #{tpu_custom_call.1} parent=5 // pred_check
        %p710 = pneg %p709
      $region50: #{tpu_custom_call.1} parent=5 // pred_check_branch
        %712 = sbr.rel (%p710) target = $region52
      $region51: #{tpu_custom_call.1} parent=5 // pred_region
        %s713 = ssub.s32 %s13, 2
        // Predicated region
        $region53: #{tpu_custom_call.1} parent=51 // pred_check
          %p714 = pneg %p110
        $region54: #{tpu_custom_call.1} parent=51 // pred_check_branch
          %716 = sbr.rel (%p714) target = $region56
        $region55: #{tpu_custom_call.1} parent=51 // pred_region
          %s717 = smul.u32 12, %s19
          %p718 = scmp.lt.s32.totalorder %s717, 35
          %s719 = scalar_select %p718, %s717, 35
          %s720 = smul.addr %s719, 8
          %s721 = scalar_lea.vmem %s3, %s720
        $region56: #{tpu_custom_call.1} parent=51 // pred_fallthru
          _
      $region52: #{tpu_custom_call.1} parent=5 // pred_fallthru
        _
    $region6: #{tpu_custom_call.1} parent=1 // loop_footer
      %s17 = sadd.s32 1, %s13
    $region7: #{tpu_custom_call.1} parent=1 // loop_footer_branch
      %12 = sbr.rel target = $region3
    $region8: #{tpu_custom_call.1} parent=1 // loop_exit
      _
    %722 = vsyncpa [#allocation3], 1
    %s723 = scalar_lea.sflag [#allocation3], 1
    %724 = vsyncpa %s723, 1
    %725 = vsyncpa [#allocation5], 1

</llo_original>
